<compile_context>
chip_gen: v6e
topology: v6e:2x2x1
jax: 0.10.0
libtpu: 0.0.40
codegen_flags: <defaults>
</compile_context>

<pallas_src>
import functools

import jax
import jax.numpy as jnp
from jax.experimental import pallas as pl
from jax.experimental.pallas import tpu as pltpu


def _round_up(v, m):
    return (v + m - 1) // m * m


def _edgeconv_kernel(diff_ref, dst_ref, w1_ref, w2_ref, w3a_ref, out_ref,
                     acc_ref, *, tile_n):
    i = pl.program_id(0)                      # node tile   ("parallel")
    k = pl.program_id(1)                      # edge tile   (reduction, last)

    @pl.when(k == 0)
    def _init():
        acc_ref[...] = jnp.zeros_like(acc_ref)

    diff = diff_ref[...]                      # [2, tE] f32 (channels-first)
    w1 = w1_ref[...]                          # [H, 2]

    # Layer 1 (K=2): VPU broadcast-FMAs; keep the MXU slot for the big matmuls.
    h = jnp.tanh(w1[:, 0:1] * diff[0:1, :] + w1[:, 1:2] * diff[1:2, :])  # [H, tE]
    # Layer 2 (HxH) on the MXU.
    h = jnp.tanh(jnp.dot(w2_ref[...], h, preferred_element_type=jnp.float32))
    # Layer 3 (H->2) with an extra zero row; that row is replaced by 1s below,
    # so a single aggregation matmul produces both message-sum and in-degree.
    proj = jnp.dot(w3a_ref[...], h, preferred_element_type=jnp.float32)  # [3, tE]
    te = proj.shape[1]
    row = jax.lax.broadcasted_iota(jnp.int32, (3, te), 0)
    msg_aug = jnp.where(row == 2, 1.0, proj)                             # [3, tE]

    # One-hot scatter block for this node tile: onehot[e, n] = (dst[e] == base+n).
    # Padded edges carry dst = -1 and therefore contribute nothing.
    node_ids = i * tile_n + jax.lax.broadcasted_iota(jnp.int32, (te, tile_n), 1)
    onehot = (dst_ref[...] == node_ids).astype(jnp.float32)              # [tE, tN]
    acc_ref[...] += jnp.dot(msg_aug, onehot, preferred_element_type=jnp.float32)

    @pl.when(k == pl.num_programs(1) - 1)
    def _finalize():
        agg = acc_ref[0:2, :]                                            # [2, tN]
        deg = acc_ref[2:3, :]                                            # [1, tN]
        inv = jnp.where(deg > 0.0,
                        pl.reciprocal(jnp.maximum(deg, 1.0), approx=True),
                        0.0)
        out_ref[...] = agg * inv                                         # [2, tN]


def edge_conv_update(x, edge_index, w1, w2, w3, *, tile_n=512, tile_e=512):
    """EdgeConvUpdate(aggr='mean').forward in Pallas (channels-first, tiled)."""
    n = x.shape[0]
    e = edge_index.shape[1]
    hidden = w1.shape[0]
    src = edge_index[0].astype(jnp.int32)
    dst = edge_index[1].astype(jnp.int32)

    # glue (plain JAX): per-edge difference x_j - x_i, channels-first [2, E].
    diff = (jnp.take(x, src, axis=0) - jnp.take(x, dst, axis=0)).T

    tile_n = min(tile_n, _round_up(n, 128))
    tile_e = min(tile_e, _round_up(e, 128))
    n_pad = _round_up(n, tile_n)
    e_pad = _round_up(e, tile_e)

    diff = jnp.pad(diff, ((0, 0), (0, e_pad - e)))
    # padded edges get dst = -1 -> match no node -> contribute 0 to agg & deg.
    dst_col = jnp.pad(dst, (0, e_pad - e), constant_values=-1).reshape(e_pad, 1)
    # append a zero row to W3 (PyTorch layout [out=2, in=H]) -> [3, H].
    w3_aug = jnp.concatenate([w3, jnp.zeros((1, hidden), w3.dtype)], axis=0)

    grid = (n_pad // tile_n, e_pad // tile_e)
    kernel = functools.partial(_edgeconv_kernel, tile_n=tile_n)

    out_cf = pl.pallas_call(
        kernel,
        out_shape=jax.ShapeDtypeStruct((2, n_pad), jnp.float32),
        grid_spec=pltpu.PrefetchScalarGridSpec(
            num_scalar_prefetch=0,
            grid=grid,
            in_specs=[
                pl.BlockSpec((2, tile_e), lambda i, k: (0, k)),        # diff
                pl.BlockSpec((tile_e, 1), lambda i, k: (k, 0)),        # dst ids
                pl.BlockSpec((hidden, 2), lambda i, k: (0, 0)),        # W1
                pl.BlockSpec((hidden, hidden), lambda i, k: (0, 0)),   # W2
                pl.BlockSpec((3, hidden), lambda i, k: (0, 0)),        # W3 (+0 row)
            ],
            out_specs=pl.BlockSpec((2, tile_n), lambda i, k: (0, i)),
            scratch_shapes=[pltpu.VMEM((3, tile_n), jnp.float32)],
        ),
        compiler_params=pltpu.CompilerParams(
            dimension_semantics=("parallel", "arbitrary"),
            vmem_limit_bytes=32 * 1024 * 1024,
        ),
    )(diff, dst_col, w1, w2, w3_aug)

    return out_cf[:, :n].T                                             # [N, 2]


def mini_update_forward(x, edge_index, batch, t, params):
    # MiniUpdate.forward returns conv_spatial(x, edge_index) only; the
    # GaussianFourierProjection / time-embed branch is computed-then-discarded
    # dead code in the reference forward.
    # TODO(synk): the t-embedding MLP is not lowered (its output is unused).
    del batch, t
    return edge_conv_update(x, edge_index, params["w1"], params["w2"], params["w3"])


def init_params(key, hidden_dim=32, in_channels=2):
    k1, k2, k3 = jax.random.split(key, 3)
    # PyTorch nn.Linear weight layout [out_features, in_features].
    w1 = jax.random.normal(k1, (hidden_dim, in_channels), jnp.float32) / jnp.sqrt(in_channels)
    w2 = jax.random.normal(k2, (hidden_dim, hidden_dim), jnp.float32) / jnp.sqrt(hidden_dim)
    w3 = jax.random.normal(k3, (2, hidden_dim), jnp.float32) / jnp.sqrt(hidden_dim)
    return {"w1": w1, "w2": w2, "w3": w3}


def _edge_conv_update_ref(x, edge_index, w1, w2, w3):
    """Pure-JAX reference (PyG EdgeConvUpdate with aggr='mean')."""
    src, dst = edge_index[0], edge_index[1]
    diff = x[src] - x[dst]
    h = jnp.tanh(diff @ w1.T)
    h = jnp.tanh(h @ w2.T)
    msg = h @ w3.T
    n = x.shape[0]
    agg = jax.ops.segment_sum(msg, dst, num_segments=n)
    deg = jax.ops.segment_sum(jnp.ones((msg.shape[0], 1), msg.dtype), dst,
                              num_segments=n)
    return jnp.where(deg > 0, agg / jnp.maximum(deg, 1.0), 0.0)


if __name__ == "__main__":
    key = jax.random.PRNGKey(0)
    k_x, k_src, k_off, k_t = jax.random.split(key, 4)

    num_nodes = 8
    num_edges = 16
    hidden_dim = 32

    x = jax.random.normal(k_x, (num_nodes, 2), jnp.float32)
    src = jax.random.randint(k_src, (num_edges,), 0, num_nodes, jnp.int32)
    off = jax.random.randint(k_off, (num_edges,), 1, num_nodes, jnp.int32)
    dst = (src + off) % num_nodes                       # no self-loops
    edge_index = jnp.stack([src, dst], axis=0)          # [2, E]
    batch = jnp.zeros((num_nodes,), jnp.int32)          # single graph
    t = jax.random.uniform(k_t, (1, 1), jnp.float32)

    params = init_params(jax.random.PRNGKey(42), hidden_dim=hidden_dim)

    out = mini_update_forward(x, edge_index, batch, t, params)
    out = jax.block_until_ready(out)
    assert out.shape == (num_nodes, 2) and out.dtype == jnp.float32

    ref = _edge_conv_update_ref(x, edge_index, params["w1"], params["w2"], params["w3"])
    assert bool(jnp.allclose(out, ref, rtol=5e-2, atol=5e-2)), (out, ref)
    print("KERNEL_OK")
</pallas_src>

<mosaic_0001>
module attributes {stable_mosaic.version = 11 : i64} {
  func.func @_edgeconv_kernel(%arg0: i32, %arg1: i32, %arg2: memref<2x128xf32, #tpu.memory_space<vmem>>, %arg3: memref<128x1xi32, #tpu.memory_space<vmem>>, %arg4: memref<32x2xf32, #tpu.memory_space<vmem>>, %arg5: memref<32x32xf32, #tpu.memory_space<vmem>>, %arg6: memref<3x32xf32, #tpu.memory_space<vmem>>, %arg7: memref<2x128xf32, #tpu.memory_space<vmem>>, %arg8: memref<3x128xf32, #tpu.memory_space<vmem>>) attributes {dimension_semantics = [#tpu.dimension_semantics<parallel>, #tpu.dimension_semantics<arbitrary>], iteration_bounds = array<i64: 1, 1>, scalar_prefetch = 0 : i64, scratch_operands = 1 : i64, tpu.core_type = #tpu.core_type<tc>, window_params = [{transform_indices = @transform_0, window_bounds = array<i64: 2, 128>}, {transform_indices = @transform_1, window_bounds = array<i64: 128, 1>}, {pipeline_mode = #tpu.pipeline_mode<synchronous>, transform_indices = @transform_2, window_bounds = array<i64: 32, 2>}, {pipeline_mode = #tpu.pipeline_mode<synchronous>, transform_indices = @transform_3, window_bounds = array<i64: 32, 32>}, {pipeline_mode = #tpu.pipeline_mode<synchronous>, transform_indices = @transform_4, window_bounds = array<i64: 3, 32>}, {transform_indices = @transform_5, window_bounds = array<i64: 2, 128>}]} {
    %c0_i32 = arith.constant 0 : i32
    %0 = arith.cmpi eq, %arg1, %c0_i32 : i32
    %1 = arith.extui %0 : i1 to i32
    %c0_i32_0 = arith.constant 0 : i32
    %2 = arith.cmpi ne, %1, %c0_i32_0 : i32
    scf.if %2 {
      %cst_19 = arith.constant 0.000000e+00 : f32
      %43 = vector.broadcast %cst_19 : f32 to vector<3x128xf32>
      %c0_20 = arith.constant 0 : index
      %c0_21 = arith.constant 0 : index
      %44 = vector.load %arg8[%c0_20, %c0_21] : memref<3x128xf32, #tpu.memory_space<vmem>>, vector<3x128xf32>
      tpu.vector_store %arg8[%c0_20, %c0_21], %43 {strides = array<i32>} : memref<3x128xf32, #tpu.memory_space<vmem>>, vector<3x128xf32>,
    } else {
    }
    %c0 = arith.constant 0 : index
    %c0_1 = arith.constant 0 : index
    %3 = vector.load %arg2[%c0, %c0_1] : memref<2x128xf32, #tpu.memory_space<vmem>>, vector<2x128xf32>
    %c0_2 = arith.constant 0 : index
    %c0_3 = arith.constant 0 : index
    %4 = vector.load %arg4[%c0_2, %c0_3] : memref<32x2xf32, #tpu.memory_space<vmem>>, vector<32x2xf32>
    %5 = vector.extract_strided_slice %4 {offsets = [0, 0], sizes = [32, 1], strides = [1, 1]} : vector<32x2xf32> to vector<32x1xf32>
    %6 = vector.extract_strided_slice %3 {offsets = [0, 0], sizes = [1, 128], strides = [1, 1]} : vector<2x128xf32> to vector<1x128xf32>
    %7 = vector.broadcast %5 : vector<32x1xf32> to vector<32x128xf32>
    %8 = vector.broadcast %6 : vector<1x128xf32> to vector<32x128xf32>
    %9 = arith.mulf %7, %8 : vector<32x128xf32>
    %10 = vector.extract_strided_slice %4 {offsets = [0, 1], sizes = [32, 1], strides = [1, 1]} : vector<32x2xf32> to vector<32x1xf32>
    %11 = vector.extract_strided_slice %3 {offsets = [1, 0], sizes = [1, 128], strides = [1, 1]} : vector<2x128xf32> to vector<1x128xf32>
    %12 = vector.broadcast %10 : vector<32x1xf32> to vector<32x128xf32>
    %13 = vector.broadcast %11 : vector<1x128xf32> to vector<32x128xf32>
    %14 = arith.mulf %12, %13 : vector<32x128xf32>
    %15 = arith.addf %9, %14 : vector<32x128xf32>
    %16 = math.tanh %15 : vector<32x128xf32>
    %c0_4 = arith.constant 0 : index
    %c0_5 = arith.constant 0 : index
    %17 = vector.load %arg5[%c0_4, %c0_5] : memref<32x32xf32, #tpu.memory_space<vmem>>, vector<32x32xf32>
    %cst = arith.constant dense<0.000000e+00> : vector<32x128xf32>
    %18 = tpu.matmul %17, %16, %cst {dimension_numbers = #tpu.dot_dimension_numbers<[1], [0], [0], [1], [0, 0, 1, 1], [], []>} : vector<32x32xf32>, vector<32x128xf32>, vector<32x128xf32> -> vector<32x128xf32>
    %19 = math.tanh %18 : vector<32x128xf32>
    %c0_6 = arith.constant 0 : index
    %c0_7 = arith.constant 0 : index
    %20 = vector.load %arg6[%c0_6, %c0_7] : memref<3x32xf32, #tpu.memory_space<vmem>>, vector<3x32xf32>
    %cst_8 = arith.constant dense<0.000000e+00> : vector<3x128xf32>
    %21 = tpu.matmul %20, %19, %cst_8 {dimension_numbers = #tpu.dot_dimension_numbers<[1], [0], [0], [1], [0, 0, 1, 1], [], []>} : vector<3x32xf32>, vector<32x128xf32>, vector<3x128xf32> -> vector<3x128xf32>
    %22 = tpu.iota {dimensions = array<i32: 0>} : vector<3x128xi32>
    %c2_i32 = arith.constant 2 : i32
    %23 = vector.broadcast %c2_i32 : i32 to vector<3x128xi32>
    %24 = arith.cmpi eq, %22, %23 : vector<3x128xi32>
    %cst_9 = arith.constant 1.000000e+00 : f32
    %25 = vector.broadcast %cst_9 : f32 to vector<3x128xf32>
    %26 = arith.select %24, %25, %21 : vector<3x128xi1>, vector<3x128xf32>
    %c128_i32 = arith.constant 128 : i32
    %27 = arith.muli %arg0, %c128_i32 : i32
    %28 = tpu.iota {dimensions = array<i32: 1>} : vector<128x128xi32>
    %29 = vector.broadcast %27 : i32 to vector<128x128xi32>
    %30 = arith.addi %29, %28 : vector<128x128xi32>
    %c0_10 = arith.constant 0 : index
    %c0_11 = arith.constant 0 : index
    %31 = vector.load %arg3[%c0_10, %c0_11] : memref<128x1xi32, #tpu.memory_space<vmem>>, vector<128x1xi32>
    %32 = vector.broadcast %31 : vector<128x1xi32> to vector<128x128xi32>
    %33 = arith.cmpi eq, %32, %30 : vector<128x128xi32>
    %34 = arith.extui %33 : vector<128x128xi1> to vector<128x128xi32>
    %35 = arith.sitofp %34 : vector<128x128xi32> to vector<128x128xf32>
    %c0_12 = arith.constant 0 : index
    %c0_13 = arith.constant 0 : index
    %36 = vector.load %arg8[%c0_12, %c0_13] : memref<3x128xf32, #tpu.memory_space<vmem>>, vector<3x128xf32>
    %cst_14 = arith.constant dense<0.000000e+00> : vector<3x128xf32>
    %37 = tpu.matmul %26, %35, %cst_14 {dimension_numbers = #tpu.dot_dimension_numbers<[1], [0], [0], [1], [0, 0, 1, 1], [], []>} : vector<3x128xf32>, vector<128x128xf32>, vector<3x128xf32> -> vector<3x128xf32>
    %38 = arith.addf %36, %37 : vector<3x128xf32>
    %c0_15 = arith.constant 0 : index
    %c0_16 = arith.constant 0 : index
    %39 = vector.load %arg8[%c0_15, %c0_16] : memref<3x128xf32, #tpu.memory_space<vmem>>, vector<3x128xf32>
    tpu.vector_store %arg8[%c0_15, %c0_16], %38 {strides = array<i32>} : memref<3x128xf32, #tpu.memory_space<vmem>>, vector<3x128xf32>,
    %c0_i32_17 = arith.constant 0 : i32
    %40 = arith.cmpi eq, %arg1, %c0_i32_17 : i32
    %41 = arith.extui %40 : i1 to i32
    %c0_i32_18 = arith.constant 0 : i32
    %42 = arith.cmpi ne, %41, %c0_i32_18 : i32
    scf.if %42 {
      %c0_19 = arith.constant 0 : index
      %c0_20 = arith.constant 0 : index
      %43 = vector.load %arg8[%c0_19, %c0_20] : memref<3x128xf32, #tpu.memory_space<vmem>>, vector<2x128xf32>
      %c2 = arith.constant 2 : index
      %c0_21 = arith.constant 0 : index
      %44 = vector.load %arg8[%c2, %c0_21] : memref<3x128xf32, #tpu.memory_space<vmem>>, vector<1x128xf32>
      %cst_22 = arith.constant 0.000000e+00 : f32
      %45 = vector.broadcast %cst_22 : f32 to vector<1x128xf32>
      %46 = arith.cmpf ogt, %44, %45 : vector<1x128xf32>
      %cst_23 = arith.constant 1.000000e+00 : f32
      %47 = vector.broadcast %cst_23 : f32 to vector<1x128xf32>
      %48 = arith.maximumf %44, %47 : vector<1x128xf32>
      %49 = tpu.reciprocal %48 {approx = true} : vector<1x128xf32> -> vector<1x128xf32>
      %cst_24 = arith.constant 0.000000e+00 : f32
      %50 = vector.broadcast %cst_24 : f32 to vector<1x128xf32>
      %51 = arith.select %46, %49, %50 : vector<1x128xi1>, vector<1x128xf32>
      %52 = vector.broadcast %51 : vector<1x128xf32> to vector<2x128xf32>
      %53 = arith.mulf %43, %52 : vector<2x128xf32>
      %c0_25 = arith.constant 0 : index
      %c0_26 = arith.constant 0 : index
      %54 = vector.load %arg7[%c0_25, %c0_26] : memref<2x128xf32, #tpu.memory_space<vmem>>, vector<2x128xf32>
      tpu.vector_store %arg7[%c0_25, %c0_26], %53 {strides = array<i32>} : memref<2x128xf32, #tpu.memory_space<vmem>>, vector<2x128xf32>,
    } else {
    }
    return
  }
  func.func @transform_0(%arg0: i32, %arg1: i32) -> (i32, i32) {
    %c0_i32 = arith.constant 0 : i32
    %c0_i32_0 = arith.constant 0 : i32
    return %c0_i32, %arg1 : i32, i32
  }
  func.func @transform_1(%arg0: i32, %arg1: i32) -> (i32, i32) {
    %c0_i32 = arith.constant 0 : i32
    %c0_i32_0 = arith.constant 0 : i32
    return %arg1, %c0_i32 : i32, i32
  }
  func.func @transform_2(%arg0: i32, %arg1: i32) -> (i32, i32) {
    %c0_i32 = arith.constant 0 : i32
    %c0_i32_0 = arith.constant 0 : i32
    %c0_i32_1 = arith.constant 0 : i32
    return %c0_i32, %c0_i32_0 : i32, i32
  }
  func.func @transform_3(%arg0: i32, %arg1: i32) -> (i32, i32) {
    %c0_i32 = arith.constant 0 : i32
    %c0_i32_0 = arith.constant 0 : i32
    %c0_i32_1 = arith.constant 0 : i32
    return %c0_i32, %c0_i32_0 : i32, i32
  }
  func.func @transform_4(%arg0: i32, %arg1: i32) -> (i32, i32) {
    %c0_i32 = arith.constant 0 : i32
    %c0_i32_0 = arith.constant 0 : i32
    %c0_i32_1 = arith.constant 0 : i32
    return %c0_i32, %c0_i32_0 : i32, i32
  }
  func.func @transform_5(%arg0: i32, %arg1: i32) -> (i32, i32) {
    %c0_i32 = arith.constant 0 : i32
    %c0_i32_0 = arith.constant 0 : i32
    return %c0_i32, %arg0 : i32, i32
  }
}

</mosaic_0001>

<llo_original>
// kernel: tpu_custom_call.1
$region0: #{tpu_custom_call.1}
  #allocation0 [shape = 'u32[]', space=smem, size = 0x4, offset = 0x4, fixed_abs, tag = 'smem constant byte address 0x4 - core index']
  #allocation1 [shape = 'u32[144,128]{1,0:T(1,128)}', space=vmem, size = 0x12000, scoped, tag = 'internal scratch']
  #allocation2 [shape = 'f32[3,128]{1,0:T(4,128)}', space=vmem, size = 0x800, scoped, tag = 'scratch operand']
  %s0 = inlined_call_operand.vmem [shape: f32[2,128], index: 0, kind: input, shape index: {}]
  %s1 = inlined_call_operand.vmem [shape: s32[128,1], index: 1, kind: input, shape index: {}]
  %s2 = inlined_call_operand.vmem [shape: f32[32,2], index: 2, kind: input, shape index: {}]
  %s3 = inlined_call_operand.vmem [shape: f32[32,32], index: 3, kind: input, shape index: {}]
  %s4 = inlined_call_operand.vmem [shape: f32[3,32], index: 4, kind: input, shape index: {}]
  %s5 = inlined_call_operand.hbm [shape: f32[2,128], index: 5, kind: output, shape index: {}]
  %s6 = sld [smem:[#allocation0]]
  $region38: #{tpu_custom_call.1} parent=0
    _
  %s8 = ssub.s32 1, %s6
  %s9 = scalar_select 0, %s8, %s6
  $region1: #{tpu_custom_call.1} parent=0
    #allocation3 [shape = 'u8[1024]{0}', space=vmem, size = 0x400, scoped, tag = 'output window, operand 0, single buffered']
    #allocation4 [shape = 's32[1]{0}', space=sflag, size = 0x4, scoped, tag = 'scoped memory for tpu_custom_call.1']
    %10 = vsyncpa [#allocation4], 0
    // Predicated region
    $region2: #{tpu_custom_call.1} parent=1 // pred_check
      _
    $region3: #{tpu_custom_call.1} parent=1 // pred_check_branch
      %12 = sbr.rel (0) target = $region5
    $region4: #{tpu_custom_call.1} parent=1 // pred_region
      _
    $region5: #{tpu_custom_call.1} parent=1 // pred_fallthru
      _
    // Predicated region
    $region6: #{tpu_custom_call.1} parent=1 // pred_check
      _
    $region7: #{tpu_custom_call.1} parent=1 // pred_check_branch
      %14 = sbr.rel (0) target = $region9
    $region8: #{tpu_custom_call.1} parent=1 // pred_region
      _
    $region9: #{tpu_custom_call.1} parent=1 // pred_fallthru
      _
    // Predicated region
    $region10: #{tpu_custom_call.1} parent=1 // pred_check
      _
    $region11: #{tpu_custom_call.1} parent=1 // pred_check_branch
      %16 = sbr.rel (0) target = $region13
    $region12: #{tpu_custom_call.1} parent=1 // pred_region
      _
    $region13: #{tpu_custom_call.1} parent=1 // pred_fallthru
      _
    // Predicated region
    $region14: #{tpu_custom_call.1} parent=1 // pred_check
      _
    $region15: #{tpu_custom_call.1} parent=1 // pred_check_branch
      %18 = sbr.rel (0) target = $region17
    $region16: #{tpu_custom_call.1} parent=1 // pred_region
      _
    $region17: #{tpu_custom_call.1} parent=1 // pred_fallthru
      _
    // Predicated region
    $region18: #{tpu_custom_call.1} parent=1 // pred_check
      _
    $region19: #{tpu_custom_call.1} parent=1 // pred_check_branch
      %20 = sbr.rel (0) target = $region21
    $region20: #{tpu_custom_call.1} parent=1 // pred_region
      _
    $region21: #{tpu_custom_call.1} parent=1 // pred_fallthru
      _
    %p21 = scmp.eq.s32.totalorder 0, 0
    // Predicated region
    $region22: #{tpu_custom_call.1} parent=1 // pred_check
      %p22 = pneg %p21
    $region23: #{tpu_custom_call.1} parent=1 // pred_check_branch
      %24 = sbr.rel (%p22) target = $region25
    $region24: #{tpu_custom_call.1} parent=1 // pred_region
      %25 = vst [vmem:[#allocation2] sm:$0x7] 0.0
    $region25: #{tpu_custom_call.1} parent=1 // pred_fallthru
      _
    %v26 = vld [vmem:[%s0] sm:$0x3]
    %v27 = vld [vmem:[%s2] sm:$0xff]
    %v28 = vld [vmem:[%s2 + $0x8] sm:$0xff]
    %v29 = vld [vmem:[%s2 + $0x10] sm:$0xff]
    %v30 = vld [vmem:[%s2 + $0x18] sm:$0xff]
    %32 = vset.pattern.permute.xlu0 0
    %33 = vperm.xlu0 %32, %v27
    %v34 = vpop.permute.xlu0 %33
    %37 = vset.pattern.permute.xlu0 0
    %38 = vperm.xlu0 %37, %v28
    %v39 = vpop.permute.xlu0 %38
    %42 = vset.pattern.permute.xlu0 0
    %43 = vperm.xlu0 %42, %v29
    %v44 = vpop.permute.xlu0 %43
    %47 = vset.pattern.permute.xlu0 0
    %48 = vperm.xlu0 %47, %v30
    %v49 = vpop.permute.xlu0 %48
    %v51 = vlaneseq
    %v52 = vshrl.u32 %v51, 7
    %v53 = vsub.s32 0, %v52
    %v54 = vrot.slane %v26, %v53
    %v55 = vmul.f32 %v34, %v54
    %v56 = vmul.f32 %v39, %v54
    %v57 = vmul.f32 %v44, %v54
    %v58 = vmul.f32 %v49, %v54
    %59 = vset.pattern.permute.xlu0 1
    %60 = vperm.xlu0 %59, %v27
    %v61 = vpop.permute.xlu0 %60
    %63 = vset.pattern.permute.xlu0 1
    %64 = vperm.xlu0 %63, %v28
    %v65 = vpop.permute.xlu0 %64
    %67 = vset.pattern.permute.xlu0 1
    %68 = vperm.xlu0 %67, %v29
    %v69 = vpop.permute.xlu0 %68
    %71 = vset.pattern.permute.xlu0 1
    %72 = vperm.xlu0 %71, %v30
    %v73 = vpop.permute.xlu0 %72
    %v75 = vlaneseq
    %v76 = vshrl.u32 %v75, 7
    %v77 = vsub.s32 1, %v76
    %v78 = vrot.slane %v26, %v77
    %v79 = vmul.f32 %v61, %v78
    %v80 = vmul.f32 %v65, %v78
    %v81 = vmul.f32 %v69, %v78
    %v82 = vmul.f32 %v73, %v78
    %v83 = vadd.f32 %v55, %v79
    %v84 = vadd.f32 %v56, %v80
    %v85 = vadd.f32 %v57, %v81
    %v86 = vadd.f32 %v58, %v82
    %v87 = vtanh.pop %v83
    %v88 = vtanh.pop %v84
    %v89 = vtanh.pop %v85
    %v90 = vtanh.pop %v86
    %v91 = vld [vmem:[%s3] sm:$0xff]
    %v92 = vld [vmem:[%s3 + $0x8] sm:$0xff]
    %v93 = vld [vmem:[%s3 + $0x10] sm:$0xff]
    %v94 = vld [vmem:[%s3 + $0x18] sm:$0xff]
    %vm95 = vcmask 261120
    %v97 = vsel %vm95, %v91, 0
    %v100 = vsel %vm95, %v92, 0
    %v103 = vsel %vm95, %v93, 0
    %v106 = vsel %vm95, %v94, 0
    %108 = vmatprep.subr.mxu0 0.0
    %109 = vmatpush1.msra.mxu0 0.0
    %110 = vmatprep.subr.mxu0 0.0
    %111 = vmatpush1.msra.mxu0 0.0
    %112 = vmatprep.subr.mxu0 0.0
    %113 = vmatpush1.msra.mxu0 0.0
    %114 = vmatprep.subr.mxu0 0.0
    %115 = vmatpush1.msra.mxu0 0.0
    %116 = vmatprep.subr.mxu0 0.0
    %117 = vmatpush1.msra.mxu0 0.0
    %118 = vmatprep.subr.mxu0 0.0
    %119 = vmatpush1.msra.mxu0 0.0
    %120 = vmatprep.subr.mxu0 0.0
    %121 = vmatpush1.msra.mxu0 0.0
    %122 = vmatprep.subr.mxu0 0.0
    %123 = vmatpush1.msra.mxu0 0.0
    %124 = vmatprep.subr.mxu0 0.0
    %125 = vmatpush1.msra.mxu0 0.0
    %126 = vmatprep.subr.mxu0 0.0
    %127 = vmatpush1.msra.mxu0 0.0
    %128 = vmatprep.subr.mxu0 0.0
    %129 = vmatpush1.msra.mxu0 0.0
    %130 = vmatprep.subr.mxu0 0.0
    %131 = vmatpush1.msra.mxu0 0.0
    %132 = vmatprep.subr.mxu0 0.0
    %133 = vmatpush1.msra.mxu0 %v90
    %134 = vmatprep.subr.mxu0 0.0
    %135 = vmatpush1.msra.mxu0 %v89
    %136 = vmatprep.subr.mxu0 0.0
    %137 = vmatpush1.msra.mxu0 %v88
    %138 = vmatprep.subr.mxu0 0.0
    %139 = vmatpush1.msra.mxu0 %v87
    %140 = vmatprep.subr.mxu0 0.0
    %141 = vmatpush2.msra.mxu0 0.0
    %142 = vmatprep.subr.mxu0 0.0
    %143 = vmatpush2.msra.mxu0 0.0
    %144 = vmatprep.subr.mxu0 0.0
    %145 = vmatpush2.msra.mxu0 0.0
    %146 = vmatprep.subr.mxu0 0.0
    %147 = vmatpush2.msra.mxu0 0.0
    %148 = vmatprep.subr.mxu0 0.0
    %149 = vmatpush2.msra.mxu0 0.0
    %150 = vmatprep.subr.mxu0 0.0
    %151 = vmatpush2.msra.mxu0 0.0
    %152 = vmatprep.subr.mxu0 0.0
    %153 = vmatpush2.msra.mxu0 0.0
    %154 = vmatprep.subr.mxu0 0.0
    %155 = vmatpush2.msra.mxu0 0.0
    %156 = vmatprep.subr.mxu0 0.0
    %157 = vmatpush2.msra.mxu0 0.0
    %158 = vmatprep.subr.mxu0 0.0
    %159 = vmatpush2.msra.mxu0 0.0
    %160 = vmatprep.subr.mxu0 0.0
    %161 = vmatpush2.msra.mxu0 0.0
    %162 = vmatprep.subr.mxu0 0.0
    %163 = vmatpush2.msra.mxu0 0.0
    %164 = vmatprep.subr.mxu0 0.0
    %165 = vmatpush2.msra.mxu0 0.0
    %166 = vmatprep.subr.mxu0 0.0
    %167 = vmatpush2.msra.mxu0 0.0
    %168 = vmatprep.subr.mxu0 0.0
    %169 = vmatpush2.msra.mxu0 0.0
    %170 = vmatprep.subr.mxu0 0.0
    %171 = vmatpush2.msra.mxu0 0.0
    %172 = vmatprep.mubr.f32.mxu0 0.0
    %173 = vmatmul.mubr.f32.gmra.mxu0 %v97
    %v174 = vpop.f32.mrf.mxu0
    %v175 = vadd.f32 0.0, %v174
    %v176 = vpop.f32.mrf.mxu0
    %177 = vmatprep.mubr.f32.mxu0 0.0
    %178 = vmatmul.mubr.f32.gmra.mxu0 %v100
    %v179 = vpop.f32.mrf.mxu0
    %v180 = vadd.f32 0.0, %v179
    %v181 = vpop.f32.mrf.mxu0
    %182 = vmatprep.mubr.f32.mxu0 0.0
    %183 = vmatmul.mubr.f32.gmra.mxu0 %v103
    %v184 = vpop.f32.mrf.mxu0
    %v185 = vadd.f32 0.0, %v184
    %v186 = vpop.f32.mrf.mxu0
    %187 = vmatprep.mubr.f32.mxu0 0.0
    %188 = vmatmul.mubr.f32.gmra.mxu0 %v106
    %v189 = vpop.f32.mrf.mxu0
    %v190 = vadd.f32 0.0, %v189
    %v191 = vpop.f32.mrf.mxu0
    %192 = vdwg.mxu0
    %v193 = vtanh.pop %v175
    %v194 = vtanh.pop %v180
    %v195 = vtanh.pop %v185
    %v196 = vtanh.pop %v190
    %v197 = vld [vmem:[%s4] sm:$0x7]
    %v199 = vsel %vm95, %v197, 0
    %201 = vmatprep.subr.mxu0 0.0
    %202 = vmatpush1.msra.mxu0 0.0
    %203 = vmatprep.subr.mxu0 0.0
    %204 = vmatpush1.msra.mxu0 0.0
    %205 = vmatprep.subr.mxu0 0.0
    %206 = vmatpush1.msra.mxu0 0.0
    %207 = vmatprep.subr.mxu0 0.0
    %208 = vmatpush1.msra.mxu0 0.0
    %209 = vmatprep.subr.mxu0 0.0
    %210 = vmatpush1.msra.mxu0 0.0
    %211 = vmatprep.subr.mxu0 0.0
    %212 = vmatpush1.msra.mxu0 0.0
    %213 = vmatprep.subr.mxu0 0.0
    %214 = vmatpush1.msra.mxu0 0.0
    %215 = vmatprep.subr.mxu0 0.0
    %216 = vmatpush1.msra.mxu0 0.0
    %217 = vmatprep.subr.mxu0 0.0
    %218 = vmatpush1.msra.mxu0 0.0
    %219 = vmatprep.subr.mxu0 0.0
    %220 = vmatpush1.msra.mxu0 0.0
    %221 = vmatprep.subr.mxu0 0.0
    %222 = vmatpush1.msra.mxu0 0.0
    %223 = vmatprep.subr.mxu0 0.0
    %224 = vmatpush1.msra.mxu0 0.0
    %225 = vmatprep.subr.mxu0 0.0
    %226 = vmatpush1.msra.mxu0 %v196
    %227 = vmatprep.subr.mxu0 0.0
    %228 = vmatpush1.msra.mxu0 %v195
    %229 = vmatprep.subr.mxu0 0.0
    %230 = vmatpush1.msra.mxu0 %v194
    %231 = vmatprep.subr.mxu0 0.0
    %232 = vmatpush1.msra.mxu0 %v193
    %233 = vmatprep.subr.mxu0 0.0
    %234 = vmatpush2.msra.mxu0 0.0
    %235 = vmatprep.subr.mxu0 0.0
    %236 = vmatpush2.msra.mxu0 0.0
    %237 = vmatprep.subr.mxu0 0.0
    %238 = vmatpush2.msra.mxu0 0.0
    %239 = vmatprep.subr.mxu0 0.0
    %240 = vmatpush2.msra.mxu0 0.0
    %241 = vmatprep.subr.mxu0 0.0
    %242 = vmatpush2.msra.mxu0 0.0
    %243 = vmatprep.subr.mxu0 0.0
    %244 = vmatpush2.msra.mxu0 0.0
    %245 = vmatprep.subr.mxu0 0.0
    %246 = vmatpush2.msra.mxu0 0.0
    %247 = vmatprep.subr.mxu0 0.0
    %248 = vmatpush2.msra.mxu0 0.0
    %249 = vmatprep.subr.mxu0 0.0
    %250 = vmatpush2.msra.mxu0 0.0
    %251 = vmatprep.subr.mxu0 0.0
    %252 = vmatpush2.msra.mxu0 0.0
    %253 = vmatprep.subr.mxu0 0.0
    %254 = vmatpush2.msra.mxu0 0.0
    %255 = vmatprep.subr.mxu0 0.0
    %256 = vmatpush2.msra.mxu0 0.0
    %257 = vmatprep.subr.mxu0 0.0
    %258 = vmatpush2.msra.mxu0 0.0
    %259 = vmatprep.subr.mxu0 0.0
    %260 = vmatpush2.msra.mxu0 0.0
    %261 = vmatprep.subr.mxu0 0.0
    %262 = vmatpush2.msra.mxu0 0.0
    %263 = vmatprep.subr.mxu0 0.0
    %264 = vmatpush2.msra.mxu0 0.0
    %265 = vmatprep.mubr.f32.mxu0 0.0
    %266 = vmatmul.mubr.f32.gmra.mxu0 %v199
    %v267 = vpop.f32.mrf.mxu0
    %v268 = vadd.f32 0.0, %v267
    %v269 = vpop.f32.mrf.mxu0
    %270 = vdwg.mxu0
    %v271 = vlaneseq
    %v272 = vshrl.u32 %v271, 7
    %vm273 = vcmp.eq.s32.totalorder %v272, 2
    %v274 = vsel %vm273, 1.0, %v268
    %s275 = smul.u32 0, 128
    %v276 = vlaneseq
    %v277 = vand.u32 %v276, 127
    %v278 = vstv %s275
    %v279 = vadd.s32 %v278, %v277
    %v280 = vld [vmem:[%s1] sm:$0xff]
    %v281 = vld [vmem:[%s1 + $0x8] sm:$0xff]
    %v282 = vld [vmem:[%s1 + $0x10] sm:$0xff]
    %v283 = vld [vmem:[%s1 + $0x18] sm:$0xff]
    %v284 = vld [vmem:[%s1 + $0x20] sm:$0xff]
    %v285 = vld [vmem:[%s1 + $0x28] sm:$0xff]
    %v286 = vld [vmem:[%s1 + $0x30] sm:$0xff]
    %v287 = vld [vmem:[%s1 + $0x38] sm:$0xff]
    %v288 = vld [vmem:[%s1 + $0x40] sm:$0xff]
    %v289 = vld [vmem:[%s1 + $0x48] sm:$0xff]
    %v290 = vld [vmem:[%s1 + $0x50] sm:$0xff]
    %v291 = vld [vmem:[%s1 + $0x58] sm:$0xff]
    %v292 = vld [vmem:[%s1 + $0x60] sm:$0xff]
    %v293 = vld [vmem:[%s1 + $0x68] sm:$0xff]
    %v294 = vld [vmem:[%s1 + $0x70] sm:$0xff]
    %v295 = vld [vmem:[%s1 + $0x78] sm:$0xff]
    %296 = vset.pattern.permute.xlu0 0
    %297 = vperm.xlu0 %296, %v280
    %v298 = vpop.permute.xlu0 %297
    %299 = vset.pattern.permute.xlu0 0
    %300 = vperm.xlu0 %299, %v281
    %v301 = vpop.permute.xlu0 %300
    %302 = vset.pattern.permute.xlu0 0
    %303 = vperm.xlu0 %302, %v282
    %v304 = vpop.permute.xlu0 %303
    %305 = vset.pattern.permute.xlu0 0
    %306 = vperm.xlu0 %305, %v283
    %v307 = vpop.permute.xlu0 %306
    %308 = vset.pattern.permute.xlu0 0
    %309 = vperm.xlu0 %308, %v284
    %v310 = vpop.permute.xlu0 %309
    %311 = vset.pattern.permute.xlu0 0
    %312 = vperm.xlu0 %311, %v285
    %v313 = vpop.permute.xlu0 %312
    %314 = vset.pattern.permute.xlu0 0
    %315 = vperm.xlu0 %314, %v286
    %v316 = vpop.permute.xlu0 %315
    %317 = vset.pattern.permute.xlu0 0
    %318 = vperm.xlu0 %317, %v287
    %v319 = vpop.permute.xlu0 %318
    %320 = vset.pattern.permute.xlu0 0
    %321 = vperm.xlu0 %320, %v288
    %v322 = vpop.permute.xlu0 %321
    %323 = vset.pattern.permute.xlu0 0
    %324 = vperm.xlu0 %323, %v289
    %v325 = vpop.permute.xlu0 %324
    %326 = vset.pattern.permute.xlu0 0
    %327 = vperm.xlu0 %326, %v290
    %v328 = vpop.permute.xlu0 %327
    %329 = vset.pattern.permute.xlu0 0
    %330 = vperm.xlu0 %329, %v291
    %v331 = vpop.permute.xlu0 %330
    %332 = vset.pattern.permute.xlu0 0
    %333 = vperm.xlu0 %332, %v292
    %v334 = vpop.permute.xlu0 %333
    %335 = vset.pattern.permute.xlu0 0
    %336 = vperm.xlu0 %335, %v293
    %v337 = vpop.permute.xlu0 %336
    %338 = vset.pattern.permute.xlu0 0
    %339 = vperm.xlu0 %338, %v294
    %v340 = vpop.permute.xlu0 %339
    %341 = vset.pattern.permute.xlu0 0
    %342 = vperm.xlu0 %341, %v295
    %v343 = vpop.permute.xlu0 %342
    %vm344 = vcmp.eq.s32.totalorder %v298, %v279
    %vm345 = vcmp.eq.s32.totalorder %v301, %v279
    %vm346 = vcmp.eq.s32.totalorder %v304, %v279
    %vm347 = vcmp.eq.s32.totalorder %v307, %v279
    %vm348 = vcmp.eq.s32.totalorder %v310, %v279
    %vm349 = vcmp.eq.s32.totalorder %v313, %v279
    %vm350 = vcmp.eq.s32.totalorder %v316, %v279
    %vm351 = vcmp.eq.s32.totalorder %v319, %v279
    %vm352 = vcmp.eq.s32.totalorder %v322, %v279
    %vm353 = vcmp.eq.s32.totalorder %v325, %v279
    %vm354 = vcmp.eq.s32.totalorder %v328, %v279
    %vm355 = vcmp.eq.s32.totalorder %v331, %v279
    %vm356 = vcmp.eq.s32.totalorder %v334, %v279
    %vm357 = vcmp.eq.s32.totalorder %v337, %v279
    %vm358 = vcmp.eq.s32.totalorder %v340, %v279
    %vm359 = vcmp.eq.s32.totalorder %v343, %v279
    %v360 = vsel %vm344, 1, 0
    %v361 = vsel %vm345, 1, 0
    %v362 = vsel %vm346, 1, 0
    %v363 = vsel %vm347, 1, 0
    %v364 = vsel %vm348, 1, 0
    %v365 = vsel %vm349, 1, 0
    %v366 = vsel %vm350, 1, 0
    %v367 = vsel %vm351, 1, 0
    %v368 = vsel %vm352, 1, 0
    %v369 = vsel %vm353, 1, 0
    %v370 = vsel %vm354, 1, 0
    %v371 = vsel %vm355, 1, 0
    %v372 = vsel %vm356, 1, 0
    %v373 = vsel %vm357, 1, 0
    %v374 = vsel %vm358, 1, 0
    %v375 = vsel %vm359, 1, 0
    %v376 = vcvt.s32.f32 %v360
    %v377 = vcvt.s32.f32 %v361
    %v378 = vcvt.s32.f32 %v362
    %v379 = vcvt.s32.f32 %v363
    %v380 = vcvt.s32.f32 %v364
    %v381 = vcvt.s32.f32 %v365
    %v382 = vcvt.s32.f32 %v366
    %v383 = vcvt.s32.f32 %v367
    %v384 = vcvt.s32.f32 %v368
    %v385 = vcvt.s32.f32 %v369
    %v386 = vcvt.s32.f32 %v370
    %v387 = vcvt.s32.f32 %v371
    %v388 = vcvt.s32.f32 %v372
    %v389 = vcvt.s32.f32 %v373
    %v390 = vcvt.s32.f32 %v374
    %v391 = vcvt.s32.f32 %v375
    %v392 = vld [vmem:[#allocation2] sm:$0x7]
    %393 = vmatprep.subr.mxu0 0.0
    %394 = vmatpush1.msra.mxu0 %v391
    %395 = vmatprep.subr.mxu0 0.0
    %396 = vmatpush1.msra.mxu0 %v390
    %397 = vmatprep.subr.mxu0 0.0
    %398 = vmatpush1.msra.mxu0 %v389
    %399 = vmatprep.subr.mxu0 0.0
    %400 = vmatpush1.msra.mxu0 %v388
    %401 = vmatprep.subr.mxu0 0.0
    %402 = vmatpush1.msra.mxu0 %v387
    %403 = vmatprep.subr.mxu0 0.0
    %404 = vmatpush1.msra.mxu0 %v386
    %405 = vmatprep.subr.mxu0 0.0
    %406 = vmatpush1.msra.mxu0 %v385
    %407 = vmatprep.subr.mxu0 0.0
    %408 = vmatpush1.msra.mxu0 %v384
    %409 = vmatprep.subr.mxu0 0.0
    %410 = vmatpush1.msra.mxu0 %v383
    %411 = vmatprep.subr.mxu0 0.0
    %412 = vmatpush1.msra.mxu0 %v382
    %413 = vmatprep.subr.mxu0 0.0
    %414 = vmatpush1.msra.mxu0 %v381
    %415 = vmatprep.subr.mxu0 0.0
    %416 = vmatpush1.msra.mxu0 %v380
    %417 = vmatprep.subr.mxu0 0.0
    %418 = vmatpush1.msra.mxu0 %v379
    %419 = vmatprep.subr.mxu0 0.0
    %420 = vmatpush1.msra.mxu0 %v378
    %421 = vmatprep.subr.mxu0 0.0
    %422 = vmatpush1.msra.mxu0 %v377
    %423 = vmatprep.subr.mxu0 0.0
    %424 = vmatpush1.msra.mxu0 %v376
    %425 = vmatprep.subr.mxu0 0.0
    %426 = vmatpush2.msra.mxu0 0.0
    %427 = vmatprep.subr.mxu0 0.0
    %428 = vmatpush2.msra.mxu0 0.0
    %429 = vmatprep.subr.mxu0 0.0
    %430 = vmatpush2.msra.mxu0 0.0
    %431 = vmatprep.subr.mxu0 0.0
    %432 = vmatpush2.msra.mxu0 0.0
    %433 = vmatprep.subr.mxu0 0.0
    %434 = vmatpush2.msra.mxu0 0.0
    %435 = vmatprep.subr.mxu0 0.0
    %436 = vmatpush2.msra.mxu0 0.0
    %437 = vmatprep.subr.mxu0 0.0
    %438 = vmatpush2.msra.mxu0 0.0
    %439 = vmatprep.subr.mxu0 0.0
    %440 = vmatpush2.msra.mxu0 0.0
    %441 = vmatprep.subr.mxu0 0.0
    %442 = vmatpush2.msra.mxu0 0.0
    %443 = vmatprep.subr.mxu0 0.0
    %444 = vmatpush2.msra.mxu0 0.0
    %445 = vmatprep.subr.mxu0 0.0
    %446 = vmatpush2.msra.mxu0 0.0
    %447 = vmatprep.subr.mxu0 0.0
    %448 = vmatpush2.msra.mxu0 0.0
    %449 = vmatprep.subr.mxu0 0.0
    %450 = vmatpush2.msra.mxu0 0.0
    %451 = vmatprep.subr.mxu0 0.0
    %452 = vmatpush2.msra.mxu0 0.0
    %453 = vmatprep.subr.mxu0 0.0
    %454 = vmatpush2.msra.mxu0 0.0
    %455 = vmatprep.subr.mxu0 0.0
    %456 = vmatpush2.msra.mxu0 0.0
    %457 = vmatprep.mubr.f32.mxu0 0.0
    %458 = vmatmul.mubr.f32.gmra.mxu0 %v274
    %v459 = vpop.f32.mrf.mxu0
    %v460 = vadd.f32 0.0, %v459
    %v461 = vpop.f32.mrf.mxu0
    %462 = vdwg.mxu0
    %v463 = vadd.f32 %v392, %v460
    %464 = vst [vmem:[#allocation2] sm:$0x7] %v463
    // Predicated region
    $region26: #{tpu_custom_call.1} parent=1 // pred_check
      %p465 = pneg %p21
    $region27: #{tpu_custom_call.1} parent=1 // pred_check_branch
      %467 = sbr.rel (%p465) target = $region29
    $region28: #{tpu_custom_call.1} parent=1 // pred_region
      %v468 = vld [vmem:[#allocation2] sm:$0x3]
      %v469 = vld [vmem:[#allocation2 + $0x2] sm:$0x1]
      %vm470 = vcmp.gt.f32.partialorder %v469, 0.0
      %v471 = vmax.f32 %v469, 1.0
      %v472 = vrcp.pop %v471
      %v473 = vsel %vm470, %v472, 0.0
      %v474 = vlaneseq
      %v475 = vshrl.u32 %v474, 7
      %v476 = vsub.s32 0, %v475
      %v477 = vrot.slane %v473, %v476
      %v478 = vmul.f32 %v468, %v477
      %479 = vst [vmem:[#allocation3] sm:$0x3] %v478
    $region29: #{tpu_custom_call.1} parent=1 // pred_fallthru
      _
    // Predicated region
    $region30: #{tpu_custom_call.1} parent=1 // pred_check
      _
    $region31: #{tpu_custom_call.1} parent=1 // pred_check_branch
      %481 = sbr.rel (0) target = $region33
    $region32: #{tpu_custom_call.1} parent=1 // pred_region
      %s483 = ssub.s32 32, 32
      %484 = vsyncadd [#allocation4], %s483
      %s486 = sshll.u32 [#allocation3], 4
      %s487 = int_to_ptr.vmem [resolvable:$true] %s486
      %489 = dma.vmem_to_hbm [thread:$0]  %s487, 32, %s5, [#allocation4]
    $region33: #{tpu_custom_call.1} parent=1 // pred_fallthru
      _
    // Predicated region
    $region34: #{tpu_custom_call.1} parent=1 // pred_check
      _
    $region35: #{tpu_custom_call.1} parent=1 // pred_check_branch
      %491 = sbr.rel (0) target = $region37
    $region36: #{tpu_custom_call.1} parent=1 // pred_region
      %492 = dma.done [#allocation4], 32
    $region37: #{tpu_custom_call.1} parent=1 // pred_fallthru
      _
    %493 = vsyncpa [#allocation4], 1

</llo_original>
